<compile_context>
chip_gen: v5e
topology: v5e:2x2
jax: 0.10.0
libtpu: 0.0.40
codegen_flags: <defaults>
</compile_context>

<pallas_src>
import functools

import jax
import jax.numpy as jnp
from jax.experimental import pallas as pl
from jax.experimental.pallas import tpu as pltpu


_LANES = 128
_MAX_TILE_ROWS = 2048  # 2048 * 128 * 4B = 1 MiB per input tile


# ----------------------------------------------------------------------------
# Pallas kernel: per-block, per-lane partial sums
# ----------------------------------------------------------------------------
def _leaky_dice_partial_kernel(p_ref, g_ref, m_ref, out_ref):
    # p_ref/g_ref/m_ref: (tile_rows, 128) tiles;  out_ref: (1, 3, 128)
    p = p_ref[...].astype(jnp.float32)
    g = g_ref[...].astype(jnp.float32)
    m = m_ref[...].astype(jnp.float32)
    pm = p * m
    inter = jnp.sum(pm * g, axis=0, keepdims=True)   # (1, 128)  sum(pred*mask*gt)
    gm_s  = jnp.sum(g * m,  axis=0, keepdims=True)   # (1, 128)  sum(gt*mask)
    pm_s  = jnp.sum(pm,     axis=0, keepdims=True)   # (1, 128)  sum(pred*mask)
    out_ref[0] = jnp.concatenate([inter, gm_s, pm_s], axis=0)  # (3, 128)


def _choose_tiling(rows):
    """Return (tile_rows, padded_rows).

    Prefers a tile that exactly divides `rows` (multiple of 8) so no HBM
    padding copy is needed; falls back to padding for awkward sizes.
    """
    if rows <= _MAX_TILE_ROWS:
        return rows, rows                      # single block == full dim
    for d in range(_MAX_TILE_ROWS, 255, -8):   # multiples of 8, >= 256 rows
        if rows % d == 0:
            return d, rows
    tile = _MAX_TILE_ROWS
    return tile, pl.cdiv(rows, tile) * tile


def _partial_sums(p2d, g2d, m2d, tile_rows):
    rows, lanes = p2d.shape
    num_blocks = rows // tile_rows
    in_spec = pl.BlockSpec((tile_rows, lanes), lambda i: (i, 0))
    partials = pl.pallas_call(
        _leaky_dice_partial_kernel,
        out_shape=jax.ShapeDtypeStruct((num_blocks, 3, lanes), jnp.float32),
        grid=(num_blocks,),
        in_specs=[in_spec, in_spec, in_spec],
        out_specs=pl.BlockSpec((1, 3, lanes), lambda i: (i, 0, 0)),
        compiler_params=pltpu.CompilerParams(
            dimension_semantics=("parallel",)),
    )(p2d, g2d, m2d)
    # tiny finalize: reduce over blocks and lanes -> (3,)
    return jnp.sum(partials, axis=(0, 2))


# ----------------------------------------------------------------------------
# LeakyDiceLoss forward
# ----------------------------------------------------------------------------
def leaky_dice_loss(pred, gt, mask, eps=1e-6, coverage_scale=5.0):
    if pred.ndim == 4:
        # PyTorch: pred = pred[:, 0, :, :]; gt = gt[:, 0, :, :]
        if pred.shape[1] == 1:
            pred = pred.reshape(pred.shape[0], *pred.shape[2:])
            gt = gt.reshape(gt.shape[0], *gt.shape[2:])
        else:
            pred = pred[:, 0]
            gt = gt[:, 0]
    assert pred.shape == gt.shape
    assert pred.shape == mask.shape

    def prep(x):
        if not jnp.issubdtype(x.dtype, jnp.floating):
            x = x.astype(jnp.float32)
        return x.reshape(-1)

    p, g, m = prep(pred), prep(gt), prep(mask)
    total = p.shape[0]
    rows = pl.cdiv(total, _LANES)
    tile_rows, padded_rows = _choose_tiling(rows)
    pad = padded_rows * _LANES - total
    if pad:
        # zeros contribute 0 to every sum (all terms are products), so exact.
        p = jnp.pad(p, (0, pad))
        g = jnp.pad(g, (0, pad))
        m = jnp.pad(m, (0, pad))
    p = p.reshape(padded_rows, _LANES)
    g = g.reshape(padded_rows, _LANES)
    m = m.reshape(padded_rows, _LANES)

    s = _partial_sums(p, g, m, tile_rows)
    inter, gm_sum, pm_sum = s[0], s[1], s[2]

    coverage = 1.0 - inter / (gm_sum + eps)
    excede = 1.0 - inter / (pm_sum + eps)
    # TODO(synk): the PyTorch forward asserts coverage<=1 and excede<=1 on
    # traced data; data-dependent asserts are not expressible here (would need
    # jax.experimental.checkify), so they are omitted.
    loss = coverage * coverage_scale + excede
    return loss, dict(coverage=coverage, excede=excede)


# ----------------------------------------------------------------------------
# Pure-JAX reference for verification
# ----------------------------------------------------------------------------
def _leaky_dice_loss_ref(pred, gt, mask, eps=1e-6, coverage_scale=5.0):
    if pred.ndim == 4:
        pred = pred[:, 0]
        gt = gt[:, 0]
    pred = pred.astype(jnp.float32)
    gt = gt.astype(jnp.float32)
    mask = mask.astype(jnp.float32)
    inter = jnp.sum(pred * mask * gt)
    coverage = 1.0 - inter / (jnp.sum(gt * mask) + eps)
    excede = 1.0 - inter / (jnp.sum(pred * mask) + eps)
    return coverage * coverage_scale + excede, coverage, excede


if __name__ == "__main__":
    jitted = jax.jit(leaky_dice_loss)

    def check(pred, gt, mask, rtol=1e-4, atol=1e-5):
        loss, extra = jitted(pred, gt, mask)
        loss = jax.block_until_ready(loss)
        ref_loss, ref_cov, ref_exc = _leaky_dice_loss_ref(pred, gt, mask)
        assert jnp.allclose(loss, ref_loss, rtol=rtol, atol=atol), (loss, ref_loss)
        assert jnp.allclose(extra["coverage"], ref_cov, rtol=rtol, atol=atol)
        assert jnp.allclose(extra["excede"], ref_exc, rtol=rtol, atol=atol)

    key = jax.random.PRNGKey(0)
    k1, k2, k3, k4, k5, k6, k7, k8, k9 = jax.random.split(key, 9)

    # 1) Canonical small 4-D case (DBNet-style probability map, 1 channel).
    N, H, W = 2, 16, 16
    pred = jax.nn.sigmoid(jax.random.normal(k1, (N, 1, H, W), jnp.float32))
    gt = (jax.random.uniform(k2, (N, 1, H, W)) > 0.5).astype(jnp.float32)
    mask = (jax.random.uniform(k3, (N, H, W)) > 0.3).astype(jnp.float32)
    check(pred, gt, mask)

    # 2) 3-D case with an awkward element count (exercises zero-pad path).
    pred3 = jax.nn.sigmoid(jax.random.normal(k4, (3, 17, 23), jnp.float32))
    gt3 = (jax.random.uniform(k5, (3, 17, 23)) > 0.5).astype(jnp.float32)
    mask3 = (jax.random.uniform(k6, (3, 17, 23)) > 0.3).astype(jnp.float32)
    check(pred3, gt3, mask3)

    # 3) Larger case exercising multi-block tiling (2 grid steps, no padding).
    Nb, Hb, Wb = 2, 160, 1024
    predb = jax.nn.sigmoid(jax.random.normal(k7, (Nb, 1, Hb, Wb), jnp.float32))
    gtb = (jax.random.uniform(k8, (Nb, 1, Hb, Wb)) > 0.5).astype(jnp.float32)
    maskb = (jax.random.uniform(k9, (Nb, Hb, Wb)) > 0.3).astype(jnp.float32)
    check(predb, gtb, maskb)

    print("KERNEL_OK")
</pallas_src>

<mosaic_0001>
module attributes {stable_mosaic.version = 11 : i64} {
  func.func @_leaky_dice_partial_kernel(%arg0: i32, %arg1: memref<4x128xf32, #tpu.memory_space<vmem>>, %arg2: memref<4x128xf32, #tpu.memory_space<vmem>>, %arg3: memref<4x128xf32, #tpu.memory_space<vmem>>, %arg4: memref<1x3x128xf32, #tpu.memory_space<vmem>>) attributes {dimension_semantics = [#tpu.dimension_semantics<parallel>], iteration_bounds = array<i64: 1>, scalar_prefetch = 0 : i64, scratch_operands = 0 : i64, tpu.core_type = #tpu.core_type<tc>, window_params = [{transform_indices = @transform_0, window_bounds = array<i64: 4, 128>}, {transform_indices = @transform_1, window_bounds = array<i64: 4, 128>}, {transform_indices = @transform_2, window_bounds = array<i64: 4, 128>}, {transform_indices = @transform_3, window_bounds = array<i64: 1, 3, 128>}]} {
    %c0 = arith.constant 0 : index
    %c0_0 = arith.constant 0 : index
    %0 = vector.load %arg1[%c0, %c0_0] : memref<4x128xf32, #tpu.memory_space<vmem>>, vector<4x128xf32>
    %c0_1 = arith.constant 0 : index
    %c0_2 = arith.constant 0 : index
    %1 = vector.load %arg2[%c0_1, %c0_2] : memref<4x128xf32, #tpu.memory_space<vmem>>, vector<4x128xf32>
    %c0_3 = arith.constant 0 : index
    %c0_4 = arith.constant 0 : index
    %2 = vector.load %arg3[%c0_3, %c0_4] : memref<4x128xf32, #tpu.memory_space<vmem>>, vector<4x128xf32>
    %3 = arith.mulf %0, %2 : vector<4x128xf32>
    %4 = arith.mulf %3, %1 : vector<4x128xf32>
    %cst = arith.constant dense<0.000000e+00> : vector<128xf32>
    %5 = vector.multi_reduction <add>, %4, %cst [0] : vector<4x128xf32> to vector<128xf32>
    %6 = vector.shape_cast %5 : vector<128xf32> to vector<1x128xf32>
    %7 = arith.mulf %1, %2 : vector<4x128xf32>
    %cst_5 = arith.constant dense<0.000000e+00> : vector<128xf32>
    %8 = vector.multi_reduction <add>, %7, %cst_5 [0] : vector<4x128xf32> to vector<128xf32>
    %9 = vector.shape_cast %8 : vector<128xf32> to vector<1x128xf32>
    %cst_6 = arith.constant dense<0.000000e+00> : vector<128xf32>
    %10 = vector.multi_reduction <add>, %3, %cst_6 [0] : vector<4x128xf32> to vector<128xf32>
    %11 = vector.shape_cast %10 : vector<128xf32> to vector<1x128xf32>
    %12 = tpu.concatenate %6, %9, %11 in 0 : vector<1x128xf32>, vector<1x128xf32>, vector<1x128xf32> -> vector<3x128xf32>
    %c0_7 = arith.constant 0 : index
    %c0_8 = arith.constant 0 : index
    %c0_9 = arith.constant 0 : index
    %13 = vector.load %arg4[%c0_7, %c0_8, %c0_9] : memref<1x3x128xf32, #tpu.memory_space<vmem>>, vector<1x3x128xf32>
    %14 = vector.shape_cast %13 : vector<1x3x128xf32> to vector<3x128xf32>
    %15 = vector.shape_cast %12 : vector<3x128xf32> to vector<1x3x128xf32>
    tpu.vector_store %arg4[%c0_7, %c0_8, %c0_9], %15 {strides = array<i32>} : memref<1x3x128xf32, #tpu.memory_space<vmem>>, vector<1x3x128xf32>,
    return
  }
  func.func @transform_0(%arg0: i32) -> (i32, i32) {
    %c0_i32 = arith.constant 0 : i32
    %c0_i32_0 = arith.constant 0 : i32
    return %arg0, %c0_i32 : i32, i32
  }
  func.func @transform_1(%arg0: i32) -> (i32, i32) {
    %c0_i32 = arith.constant 0 : i32
    %c0_i32_0 = arith.constant 0 : i32
    return %arg0, %c0_i32 : i32, i32
  }
  func.func @transform_2(%arg0: i32) -> (i32, i32) {
    %c0_i32 = arith.constant 0 : i32
    %c0_i32_0 = arith.constant 0 : i32
    return %arg0, %c0_i32 : i32, i32
  }
  func.func @transform_3(%arg0: i32) -> (i32, i32, i32) {
    %c0_i32 = arith.constant 0 : i32
    %c0_i32_0 = arith.constant 0 : i32
    %c0_i32_1 = arith.constant 0 : i32
    return %arg0, %c0_i32, %c0_i32_0 : i32, i32, i32
  }
}

</mosaic_0001>

<llo_original>
// kernel: leaky_dice_loss.1
$region0: #{leaky_dice_loss.1}
  #allocation0 [shape = 'u32[]', space=smem, size = 0x4, offset = 0x4, fixed_abs, tag = 'smem constant byte address 0x4 - core index']
  #allocation1 [shape = 'u32[72,128]{1,0:T(1,128)}', space=vmem, size = 0x9000, scoped, tag = 'internal scratch']
  %s0 = inlined_call_operand.vmem [shape: f32[4,128], index: 0, kind: input, shape index: {}]
  %s1 = inlined_call_operand.vmem [shape: f32[4,128], index: 1, kind: input, shape index: {}]
  %s2 = inlined_call_operand.vmem [shape: f32[4,128], index: 2, kind: input, shape index: {}]
  %s3 = inlined_call_operand.vmem [shape: f32[1,3,128], index: 3, kind: output, shape index: {}]
  %s4 = sld [smem:[#allocation0]]
  $region22: #{leaky_dice_loss.1} parent=0
    _
  %s6 = ssub.s32 1, %s4
  %s7 = scalar_select 0, %s6, %s4
  // Predicated region
  $region2: #{leaky_dice_loss.1} parent=0 // pred_check
    _
  $region3: #{leaky_dice_loss.1} parent=0 // pred_check_branch
    %9 = sbr.rel (0) target = $region5
  $region4: #{leaky_dice_loss.1} parent=0 // pred_region
    _
  $region5: #{leaky_dice_loss.1} parent=0 // pred_fallthru
    _
  // Predicated region
  $region6: #{leaky_dice_loss.1} parent=0 // pred_check
    _
  $region7: #{leaky_dice_loss.1} parent=0 // pred_check_branch
    %11 = sbr.rel (0) target = $region9
  $region8: #{leaky_dice_loss.1} parent=0 // pred_region
    _
  $region9: #{leaky_dice_loss.1} parent=0 // pred_fallthru
    _
  // Predicated region
  $region10: #{leaky_dice_loss.1} parent=0 // pred_check
    _
  $region11: #{leaky_dice_loss.1} parent=0 // pred_check_branch
    %13 = sbr.rel (0) target = $region13
  $region12: #{leaky_dice_loss.1} parent=0 // pred_region
    _
  $region13: #{leaky_dice_loss.1} parent=0 // pred_fallthru
    _
  %v14 = vld [vmem:[%s0] sm:$0xf]
  %v15 = vld [vmem:[%s1] sm:$0xf]
  %v16 = vld [vmem:[%s2] sm:$0xf]
  %v17 = vmul.f32 %v14, %v16
  %v18 = vmul.f32 %v17, %v15
  %vm19 = vcmask 1043456
  %v20 = vsel %vm19, %v18, 0.0
  %v21 = vrot.slane %v20, 4
  %v22 = vadd.f32 %v20, %v21
  %v23 = vrot.slane %v22, 2
  %v24 = vadd.f32 %v22, %v23
  %v25 = vrot.slane %v24, 1
  %v26 = vadd.f32 %v24, %v25
  %v27 = vmul.f32 %v15, %v16
  %v28 = vsel %vm19, %v27, 0.0
  %v29 = vrot.slane %v28, 4
  %v30 = vadd.f32 %v28, %v29
  %v31 = vrot.slane %v30, 2
  %v32 = vadd.f32 %v30, %v31
  %v33 = vrot.slane %v32, 1
  %v34 = vadd.f32 %v32, %v33
  %v35 = vsel %vm19, %v17, 0.0
  %v36 = vrot.slane %v35, 4
  %v37 = vadd.f32 %v35, %v36
  %v38 = vrot.slane %v37, 2
  %v39 = vadd.f32 %v37, %v38
  %v40 = vrot.slane %v39, 1
  %v41 = vadd.f32 %v39, %v40
  %vm42 = vcmask 1040384
  %v43 = vsel %vm42, %v26, %v34
  %vm44 = vcmask 1041408
  %v45 = vsel %vm44, %v43, %v41
  %46 = vst [vmem:[%s3] sm:$0x7] %v45
  // Predicated region
  $region14: #{leaky_dice_loss.1} parent=0 // pred_check
    _
  $region15: #{leaky_dice_loss.1} parent=0 // pred_check_branch
    %48 = sbr.rel (0) target = $region17
  $region16: #{leaky_dice_loss.1} parent=0 // pred_region
    _
  $region17: #{leaky_dice_loss.1} parent=0 // pred_fallthru
    _
  // Predicated region
  $region18: #{leaky_dice_loss.1} parent=0 // pred_check
    _
  $region19: #{leaky_dice_loss.1} parent=0 // pred_check_branch
    %50 = sbr.rel (0) target = $region21
  $region20: #{leaky_dice_loss.1} parent=0 // pred_region
    _
  $region21: #{leaky_dice_loss.1} parent=0 // pred_fallthru
    _

</llo_original>
